<compile_context>
chip_gen: v5e
topology: v5e:2x2
jax: 0.10.0
libtpu: 0.0.40
codegen_flags: <defaults>
</compile_context>

<pallas_src>
import jax
import jax.numpy as jnp
from jax.experimental import pallas as pl
from jax.experimental.pallas import tpu as pltpu


# --------------------------------------------------------------------------
# Shared forward math (used by the kernel body AND the bit-matched reference)
# --------------------------------------------------------------------------
def _forward_math(h_id, x, weights, n_emb, n_mid, out_dim,
                  sigma_min, sigma_max, compute_dtype):
    """weights (iterable, in order):
         [W_e, b_e] * n_emb,
         W0x, W0e, b0,
         [W_mid, b_mid] * n_mid,
         W_head_fused, b_head_fused
       Weights are `compute_dtype`, biases are f32 (1, out) rows.
       Returns f32 (tb, 2*out_dim) slab = [mu || sigma]."""
    it = iter(weights)

    def dot32(a, b):
        return jnp.dot(a, b, preferred_element_type=jnp.float32)

    def swish(v):  # f32 in -> compute_dtype out
        return (v * jax.nn.sigmoid(v)).astype(compute_dtype)

    # ---- embedding MLP: swish hiddens, tanh output ----
    h = h_id
    for i in range(n_emb):
        w = next(it)
        b = next(it)
        v = dot32(h, w) + b
        h = swish(v) if i < n_emb - 1 else jnp.tanh(v).astype(compute_dtype)

    # ---- base MLP layer 0 (concat avoided via split weight), swish ----
    w0x = next(it)
    w0e = next(it)
    b0 = next(it)
    z = swish(dot32(x, w0x) + dot32(h, w0e) + b0)

    # ---- remaining hidden base layers (swish); the identity-activated final
    #      base layer was folded into the head weights offline ----
    for _ in range(n_mid):
        w = next(it)
        b = next(it)
        z = swish(dot32(z, w) + b)

    # ---- fused mu||sigma head ----
    w_hd = next(it)
    b_hd = next(it)
    hd = dot32(z, w_hd) + b_hd
    sg = jnp.exp(jnp.clip(hd[:, out_dim:], sigma_min, sigma_max))
    return jnp.concatenate([hd[:, :out_dim], sg], axis=-1)


# --------------------------------------------------------------------------
# Kernel
# --------------------------------------------------------------------------
def _build_kernel(n_emb, n_mid, out_dim, sigma_min, sigma_max, compute_dtype):
    def kernel(*refs):
        id_ref, x_ref = refs[0], refs[1]
        out_ref = refs[-1]
        weights = [r[...] for r in refs[2:-1]]
        out = _forward_math(id_ref[...], x_ref[...], weights, n_emb, n_mid,
                            out_dim, sigma_min, sigma_max, compute_dtype)
        out_ref[...] = out.astype(out_ref.dtype)

    return kernel


# --------------------------------------------------------------------------
# Weight preprocessing (folding + head fusion + dtype casts)
# --------------------------------------------------------------------------
def _round_up(a, m):
    return (a + m - 1) // m * m


def _prepare_weights(params, input_dim, compute_dtype):
    emb = params["embedding"]
    base = params["base"]
    w_mu, b_mu = params["mu"]
    w_sg, b_sg = params["sigma"]
    # The PyTorch MLP always has >= 1 hidden Linear + 1 final Linear, so the
    # identity-activated final base layer can always be folded into the heads.
    assert len(base) >= 2, "base MLP must have >= 2 linear layers"

    f32 = jnp.float32

    def row(b):
        return jnp.asarray(b, f32).reshape(1, -1)

    def wcast(w):
        return jnp.asarray(w, f32).astype(compute_dtype)

    # Fold identity final base layer into the fused mu||sigma head (in f32).
    w_last, b_last = base[-1]
    w_head = jnp.concatenate([jnp.asarray(w_mu, f32), jnp.asarray(w_sg, f32)], axis=1)
    b_head = jnp.concatenate([jnp.asarray(b_mu, f32), jnp.asarray(b_sg, f32)], axis=0)
    w_head_fold = jnp.asarray(w_last, f32) @ w_head
    b_head_fold = jnp.asarray(b_last, f32) @ w_head + b_head

    kernel_base = base[:-1]                    # all swish-activated
    w0, b0 = kernel_base[0]
    w0 = jnp.asarray(w0, f32)
    w0x, w0e = w0[:input_dim], w0[input_dim:]  # concat-free split

    weights = []
    for w, b in emb:
        weights += [wcast(w), row(b)]
    weights += [wcast(w0x), wcast(w0e), row(b0)]
    for w, b in kernel_base[1:]:
        weights += [wcast(w), row(b)]
    weights += [wcast(w_head_fold), row(b_head_fold)]

    out_dim = jnp.asarray(w_mu).shape[-1]
    return weights, len(emb), len(kernel_base) - 1, out_dim


# --------------------------------------------------------------------------
# Wrapper
# --------------------------------------------------------------------------
def gaussian_mlp_forward(id_cate, x, params, *, sigma_min=-20.0, sigma_max=0.0,
                         block_b=None, compute_dtype=jnp.bfloat16):
    """Pallas TPU implementation of GaussianMLP.forward.

    params = {
      "embedding": [(W, b), ...],   # W stored as (in, out), b as (out,)
      "base":      [(W, b), ...],
      "mu":        (W, b),
      "sigma":     (W, b),
    }
    Returns (mu, sigma), each (batch, output_dim), in x.dtype.
    """
    B = x.shape[0]
    assert id_cate.shape[0] == B
    input_dim = x.shape[-1]
    id_dim = id_cate.shape[-1]
    out_dtype = x.dtype

    weights, n_emb, n_mid, out_dim = _prepare_weights(params, input_dim,
                                                      compute_dtype)

    # Sublane alignment (16 for 2-byte compute dtype, 8 for f32).
    align = 16 if jnp.dtype(compute_dtype).itemsize == 2 else 8
    pad_b = _round_up(B, align)

    id_c = id_cate.astype(compute_dtype)
    x_c = x.astype(compute_dtype)
    if pad_b != B:
        # Tiny tail pad (< align rows) only; no full-array rebuild.
        id_c = jnp.pad(id_c, ((0, pad_b - B), (0, 0)))
        x_c = jnp.pad(x_c, ((0, pad_b - B), (0, 0)))

    # Batch tile: large (amortize per-step overhead) but ensure >= 2 grid steps
    # when possible so the "parallel" axis can shard across v7x's 2 TensorCores.
    if block_b is None:
        tb = min(2048, pad_b)
        if pad_b >= 2 * align and pad_b // tb < 2:
            tb = _round_up(pl.cdiv(pad_b, 2), align)
    else:
        tb = block_b
    grid = pl.cdiv(pad_b, tb)

    kernel = _build_kernel(n_emb, n_mid, out_dim,
                           float(sigma_min), float(sigma_max), compute_dtype)

    def batch_spec(feat):
        return pl.BlockSpec((tb, feat), lambda i: (i, 0))

    def resident_spec(a):
        # Full-array block, constant index -> stays resident in VMEM across steps.
        return pl.BlockSpec(a.shape, lambda i: (0, 0))

    packed = pl.pallas_call(
        kernel,
        out_shape=jax.ShapeDtypeStruct((pad_b, 2 * out_dim), out_dtype),
        grid_spec=pltpu.PrefetchScalarGridSpec(
            num_scalar_prefetch=0,
            grid=(grid,),
            in_specs=[batch_spec(id_dim), batch_spec(input_dim)]
                     + [resident_spec(a) for a in weights],
            out_specs=batch_spec(2 * out_dim),
        ),
        compiler_params=pltpu.CompilerParams(
            dimension_semantics=("parallel",)),
    )(id_c, x_c, *weights)

    return packed[:B, :out_dim], packed[:B, out_dim:]


# --------------------------------------------------------------------------
# References
# --------------------------------------------------------------------------
def _reference_f32(id_cate, x, params, sigma_min, sigma_max):
    """Pure f32 reference mirroring the PyTorch forward exactly."""
    h = id_cate
    emb = params["embedding"]
    for i, (w, b) in enumerate(emb):
        h = h @ w + b
        h = jnp.tanh(h) if i == len(emb) - 1 else h * jax.nn.sigmoid(h)
    z = jnp.concatenate([x, h], axis=-1)
    base = params["base"]
    for i, (w, b) in enumerate(base):
        z = z @ w + b
        if i < len(base) - 1:
            z = z * jax.nn.sigmoid(z)
    w_mu, b_mu = params["mu"]
    w_sg, b_sg = params["sigma"]
    mu = z @ w_mu + b_mu
    sigma = jnp.exp(jnp.clip(z @ w_sg + b_sg, sigma_min, sigma_max))
    return mu, sigma


def _reference_mirror(id_cate, x, params, sigma_min, sigma_max, compute_dtype):
    """Pure-JAX replica of exactly what the kernel computes (same folding,
    same bf16 casts, f32 accumulation)."""
    input_dim = x.shape[-1]
    weights, n_emb, n_mid, out_dim = _prepare_weights(params, input_dim,
                                                      compute_dtype)
    out = _forward_math(id_cate.astype(compute_dtype), x.astype(compute_dtype),
                        list(weights), n_emb, n_mid, out_dim,
                        float(sigma_min), float(sigma_max), compute_dtype)
    return out[:, :out_dim], out[:, out_dim:]


# --------------------------------------------------------------------------
# Demo / self-test
# --------------------------------------------------------------------------
if __name__ == "__main__":
    # Small, deterministic configuration (exercises a 2-step parallel grid).
    B = 32
    input_dim = 32
    id_cate_dim = 16
    embedding_dim = 16
    embedding_hidden_dims = [32]
    base_hidden_dims = [64, 64]          # imme_dim = 64
    output_dim = 8
    sigma_min, sigma_max = -20.0, 0.0

    key = jax.random.PRNGKey(0)

    def init_linear(k, d_in, d_out):
        kw, kb = jax.random.split(k)
        w = jax.random.normal(kw, (d_in, d_out), dtype=jnp.float32) / jnp.sqrt(
            jnp.float32(d_in))
        b = 0.01 * jax.random.normal(kb, (d_out,), dtype=jnp.float32)
        return w, b

    keys = jax.random.split(key, 16)
    ki = iter(keys)

    # embedding MLP: id_cate_dim -> hidden dims -> embedding_dim
    emb_dims = [id_cate_dim] + embedding_hidden_dims + [embedding_dim]
    emb_layers = [init_linear(next(ki), emb_dims[i], emb_dims[i + 1])
                  for i in range(len(emb_dims) - 1)]

    # base MLP: (input_dim + embedding_dim) -> base hidden dims -> imme_dim
    imme_dim = base_hidden_dims[-1]
    base_dims = [input_dim + embedding_dim] + base_hidden_dims + [imme_dim]
    base_layers = [init_linear(next(ki), base_dims[i], base_dims[i + 1])
                   for i in range(len(base_dims) - 1)]

    params = {
        "embedding": emb_layers,
        "base": base_layers,
        "mu": init_linear(next(ki), imme_dim, output_dim),
        "sigma": init_linear(next(ki), imme_dim, output_dim),
    }

    k_id, k_x = jax.random.split(next(ki))
    id_cate = jax.random.normal(k_id, (B, id_cate_dim), dtype=jnp.float32)
    x = jax.random.normal(k_x, (B, input_dim), dtype=jnp.float32)

    mu, sigma = gaussian_mlp_forward(id_cate, x, params,
                                     sigma_min=sigma_min, sigma_max=sigma_max)
    jax.block_until_ready((mu, sigma))

    # Tight check vs the numerics-matched (bf16-quantized, folded) reference.
    mu_m, sg_m = _reference_mirror(id_cate, x, params, sigma_min, sigma_max,
                                   jnp.bfloat16)
    # Loose semantic check vs the exact f32 PyTorch-equivalent reference.
    mu_f, sg_f = _reference_f32(id_cate, x, params, sigma_min, sigma_max)

    assert mu.shape == (B, output_dim) and sigma.shape == (B, output_dim)
    assert jnp.allclose(mu, mu_m, atol=1e-2, rtol=1e-2)
    assert jnp.allclose(sigma, sg_m, atol=1e-2, rtol=1e-2)
    assert jnp.allclose(mu, mu_f, atol=6e-2, rtol=6e-2)
    assert jnp.allclose(sigma, sg_f, atol=6e-2, rtol=6e-2)
    assert bool(jnp.all(sigma > 0.0)) and bool(jnp.all(sigma <= 1.0 + 1e-6))

    print("KERNEL_OK")
</pallas_src>

<mosaic_0001>
module attributes {stable_mosaic.version = 11 : i64} {
  func.func @kernel(%arg0: i32, %arg1: memref<16x16xbf16, #tpu.memory_space<vmem>>, %arg2: memref<16x32xbf16, #tpu.memory_space<vmem>>, %arg3: memref<16x32xbf16, #tpu.memory_space<vmem>>, %arg4: memref<1x32xf32, #tpu.memory_space<vmem>>, %arg5: memref<32x16xbf16, #tpu.memory_space<vmem>>, %arg6: memref<1x16xf32, #tpu.memory_space<vmem>>, %arg7: memref<32x64xbf16, #tpu.memory_space<vmem>>, %arg8: memref<16x64xbf16, #tpu.memory_space<vmem>>, %arg9: memref<1x64xf32, #tpu.memory_space<vmem>>, %arg10: memref<64x64xbf16, #tpu.memory_space<vmem>>, %arg11: memref<1x64xf32, #tpu.memory_space<vmem>>, %arg12: memref<64x16xbf16, #tpu.memory_space<vmem>>, %arg13: memref<1x16xf32, #tpu.memory_space<vmem>>, %arg14: memref<16x16xf32, #tpu.memory_space<vmem>>) attributes {dimension_semantics = [#tpu.dimension_semantics<parallel>], iteration_bounds = array<i64: 2>, scalar_prefetch = 0 : i64, scratch_operands = 0 : i64, tpu.core_type = #tpu.core_type<tc>, window_params = [{transform_indices = @transform_0, window_bounds = array<i64: 16, 16>}, {transform_indices = @transform_1, window_bounds = array<i64: 16, 32>}, {pipeline_mode = #tpu.pipeline_mode<synchronous>, transform_indices = @transform_2, window_bounds = array<i64: 16, 32>}, {pipeline_mode = #tpu.pipeline_mode<synchronous>, transform_indices = @transform_3, window_bounds = array<i64: 1, 32>}, {pipeline_mode = #tpu.pipeline_mode<synchronous>, transform_indices = @transform_4, window_bounds = array<i64: 32, 16>}, {pipeline_mode = #tpu.pipeline_mode<synchronous>, transform_indices = @transform_5, window_bounds = array<i64: 1, 16>}, {pipeline_mode = #tpu.pipeline_mode<synchronous>, transform_indices = @transform_6, window_bounds = array<i64: 32, 64>}, {pipeline_mode = #tpu.pipeline_mode<synchronous>, transform_indices = @transform_7, window_bounds = array<i64: 16, 64>}, {pipeline_mode = #tpu.pipeline_mode<synchronous>, transform_indices = @transform_8, window_bounds = array<i64: 1, 64>}, {pipeline_mode = #tpu.pipeline_mode<synchronous>, transform_indices = @transform_9, window_bounds = array<i64: 64, 64>}, {pipeline_mode = #tpu.pipeline_mode<synchronous>, transform_indices = @transform_10, window_bounds = array<i64: 1, 64>}, {pipeline_mode = #tpu.pipeline_mode<synchronous>, transform_indices = @transform_11, window_bounds = array<i64: 64, 16>}, {pipeline_mode = #tpu.pipeline_mode<synchronous>, transform_indices = @transform_12, window_bounds = array<i64: 1, 16>}, {transform_indices = @transform_13, window_bounds = array<i64: 16, 16>}]} {
    %c0 = arith.constant 0 : index
    %c0_0 = arith.constant 0 : index
    %0 = vector.load %arg3[%c0, %c0_0] : memref<16x32xbf16, #tpu.memory_space<vmem>>, vector<16x32xbf16>
    %c0_1 = arith.constant 0 : index
    %c0_2 = arith.constant 0 : index
    %1 = vector.load %arg4[%c0_1, %c0_2] : memref<1x32xf32, #tpu.memory_space<vmem>>, vector<1x32xf32>
    %c0_3 = arith.constant 0 : index
    %c0_4 = arith.constant 0 : index
    %2 = vector.load %arg5[%c0_3, %c0_4] : memref<32x16xbf16, #tpu.memory_space<vmem>>, vector<32x16xbf16>
    %c0_5 = arith.constant 0 : index
    %c0_6 = arith.constant 0 : index
    %3 = vector.load %arg6[%c0_5, %c0_6] : memref<1x16xf32, #tpu.memory_space<vmem>>, vector<1x16xf32>
    %c0_7 = arith.constant 0 : index
    %c0_8 = arith.constant 0 : index
    %4 = vector.load %arg7[%c0_7, %c0_8] : memref<32x64xbf16, #tpu.memory_space<vmem>>, vector<32x64xbf16>
    %c0_9 = arith.constant 0 : index
    %c0_10 = arith.constant 0 : index
    %5 = vector.load %arg8[%c0_9, %c0_10] : memref<16x64xbf16, #tpu.memory_space<vmem>>, vector<16x64xbf16>
    %c0_11 = arith.constant 0 : index
    %c0_12 = arith.constant 0 : index
    %6 = vector.load %arg9[%c0_11, %c0_12] : memref<1x64xf32, #tpu.memory_space<vmem>>, vector<1x64xf32>
    %c0_13 = arith.constant 0 : index
    %c0_14 = arith.constant 0 : index
    %7 = vector.load %arg10[%c0_13, %c0_14] : memref<64x64xbf16, #tpu.memory_space<vmem>>, vector<64x64xbf16>
    %c0_15 = arith.constant 0 : index
    %c0_16 = arith.constant 0 : index
    %8 = vector.load %arg11[%c0_15, %c0_16] : memref<1x64xf32, #tpu.memory_space<vmem>>, vector<1x64xf32>
    %c0_17 = arith.constant 0 : index
    %c0_18 = arith.constant 0 : index
    %9 = vector.load %arg12[%c0_17, %c0_18] : memref<64x16xbf16, #tpu.memory_space<vmem>>, vector<64x16xbf16>
    %c0_19 = arith.constant 0 : index
    %c0_20 = arith.constant 0 : index
    %10 = vector.load %arg13[%c0_19, %c0_20] : memref<1x16xf32, #tpu.memory_space<vmem>>, vector<1x16xf32>
    %c0_21 = arith.constant 0 : index
    %c0_22 = arith.constant 0 : index
    %11 = vector.load %arg1[%c0_21, %c0_22] : memref<16x16xbf16, #tpu.memory_space<vmem>>, vector<16x16xbf16>
    %c0_23 = arith.constant 0 : index
    %c0_24 = arith.constant 0 : index
    %12 = vector.load %arg2[%c0_23, %c0_24] : memref<16x32xbf16, #tpu.memory_space<vmem>>, vector<16x32xbf16>
    %cst = arith.constant dense<0.000000e+00> : vector<16x32xf32>
    %13 = tpu.matmul %11, %0, %cst {dimension_numbers = #tpu.dot_dimension_numbers<[1], [0], [0], [1], [0, 0, 1, 1], [], []>} : vector<16x16xbf16>, vector<16x32xbf16>, vector<16x32xf32> -> vector<16x32xf32>
    %14 = vector.broadcast %1 : vector<1x32xf32> to vector<16x32xf32>
    %15 = arith.addf %13, %14 : vector<16x32xf32>
    %16 = arith.negf %15 : vector<16x32xf32>
    %17 = math.exp %16 : vector<16x32xf32>
    %cst_25 = arith.constant 1.000000e+00 : f32
    %18 = vector.broadcast %cst_25 : f32 to vector<16x32xf32>
    %19 = arith.addf %18, %17 : vector<16x32xf32>
    %20 = arith.divf %18, %19 : vector<16x32xf32>
    %21 = arith.mulf %15, %20 : vector<16x32xf32>
    %22 = arith.truncf %21 : vector<16x32xf32> to vector<16x32xbf16>
    %cst_26 = arith.constant dense<0.000000e+00> : vector<16x16xf32>
    %23 = tpu.matmul %22, %2, %cst_26 {dimension_numbers = #tpu.dot_dimension_numbers<[1], [0], [0], [1], [0, 0, 1, 1], [], []>} : vector<16x32xbf16>, vector<32x16xbf16>, vector<16x16xf32> -> vector<16x16xf32>
    %24 = vector.broadcast %3 : vector<1x16xf32> to vector<16x16xf32>
    %25 = arith.addf %23, %24 : vector<16x16xf32>
    %26 = math.tanh %25 : vector<16x16xf32>
    %27 = arith.truncf %26 : vector<16x16xf32> to vector<16x16xbf16>
    %cst_27 = arith.constant dense<0.000000e+00> : vector<16x64xf32>
    %28 = tpu.matmul %12, %4, %cst_27 {dimension_numbers = #tpu.dot_dimension_numbers<[1], [0], [0], [1], [0, 0, 1, 1], [], []>} : vector<16x32xbf16>, vector<32x64xbf16>, vector<16x64xf32> -> vector<16x64xf32>
    %cst_28 = arith.constant dense<0.000000e+00> : vector<16x64xf32>
    %29 = tpu.matmul %27, %5, %cst_28 {dimension_numbers = #tpu.dot_dimension_numbers<[1], [0], [0], [1], [0, 0, 1, 1], [], []>} : vector<16x16xbf16>, vector<16x64xbf16>, vector<16x64xf32> -> vector<16x64xf32>
    %30 = arith.addf %28, %29 : vector<16x64xf32>
    %31 = vector.broadcast %6 : vector<1x64xf32> to vector<16x64xf32>
    %32 = arith.addf %30, %31 : vector<16x64xf32>
    %33 = arith.negf %32 : vector<16x64xf32>
    %34 = math.exp %33 : vector<16x64xf32>
    %cst_29 = arith.constant 1.000000e+00 : f32
    %35 = vector.broadcast %cst_29 : f32 to vector<16x64xf32>
    %36 = arith.addf %35, %34 : vector<16x64xf32>
    %37 = arith.divf %35, %36 : vector<16x64xf32>
    %38 = arith.mulf %32, %37 : vector<16x64xf32>
    %39 = arith.truncf %38 : vector<16x64xf32> to vector<16x64xbf16>
    %cst_30 = arith.constant dense<0.000000e+00> : vector<16x64xf32>
    %40 = tpu.matmul %39, %7, %cst_30 {dimension_numbers = #tpu.dot_dimension_numbers<[1], [0], [0], [1], [0, 0, 1, 1], [], []>} : vector<16x64xbf16>, vector<64x64xbf16>, vector<16x64xf32> -> vector<16x64xf32>
    %41 = vector.broadcast %8 : vector<1x64xf32> to vector<16x64xf32>
    %42 = arith.addf %40, %41 : vector<16x64xf32>
    %43 = arith.negf %42 : vector<16x64xf32>
    %44 = math.exp %43 : vector<16x64xf32>
    %cst_31 = arith.constant 1.000000e+00 : f32
    %45 = vector.broadcast %cst_31 : f32 to vector<16x64xf32>
    %46 = arith.addf %45, %44 : vector<16x64xf32>
    %47 = arith.divf %45, %46 : vector<16x64xf32>
    %48 = arith.mulf %42, %47 : vector<16x64xf32>
    %49 = arith.truncf %48 : vector<16x64xf32> to vector<16x64xbf16>
    %cst_32 = arith.constant dense<0.000000e+00> : vector<16x16xf32>
    %50 = tpu.matmul %49, %9, %cst_32 {dimension_numbers = #tpu.dot_dimension_numbers<[1], [0], [0], [1], [0, 0, 1, 1], [], []>} : vector<16x64xbf16>, vector<64x16xbf16>, vector<16x16xf32> -> vector<16x16xf32>
    %51 = vector.broadcast %10 : vector<1x16xf32> to vector<16x16xf32>
    %52 = arith.addf %50, %51 : vector<16x16xf32>
    %53 = vector.extract_strided_slice %52 {offsets = [0, 8], sizes = [16, 8], strides = [1, 1]} : vector<16x16xf32> to vector<16x8xf32>
    %cst_33 = arith.constant -2.000000e+01 : f32
    %cst_34 = arith.constant 0.000000e+00 : f32
    %54 = vector.broadcast %cst_33 : f32 to vector<16x8xf32>
    %55 = arith.maximumf %54, %53 : vector<16x8xf32>
    %56 = vector.broadcast %cst_34 : f32 to vector<16x8xf32>
    %57 = arith.minimumf %56, %55 : vector<16x8xf32>
    %58 = math.exp %57 : vector<16x8xf32>
    %59 = vector.extract_strided_slice %52 {offsets = [0, 0], sizes = [16, 8], strides = [1, 1]} : vector<16x16xf32> to vector<16x8xf32>
    %60 = tpu.concatenate %59, %58 in 1 : vector<16x8xf32>, vector<16x8xf32> -> vector<16x16xf32>
    %c0_35 = arith.constant 0 : index
    %c0_36 = arith.constant 0 : index
    %61 = vector.load %arg14[%c0_35, %c0_36] : memref<16x16xf32, #tpu.memory_space<vmem>>, vector<16x16xf32>
    tpu.vector_store %arg14[%c0_35, %c0_36], %60 {strides = array<i32>} : memref<16x16xf32, #tpu.memory_space<vmem>>, vector<16x16xf32>,
    return
  }
  func.func @transform_0(%arg0: i32) -> (i32, i32) {
    %c0_i32 = arith.constant 0 : i32
    %c0_i32_0 = arith.constant 0 : i32
    return %arg0, %c0_i32 : i32, i32
  }
  func.func @transform_1(%arg0: i32) -> (i32, i32) {
    %c0_i32 = arith.constant 0 : i32
    %c0_i32_0 = arith.constant 0 : i32
    return %arg0, %c0_i32 : i32, i32
  }
  func.func @transform_2(%arg0: i32) -> (i32, i32) {
    %c0_i32 = arith.constant 0 : i32
    %c0_i32_0 = arith.constant 0 : i32
    %c0_i32_1 = arith.constant 0 : i32
    return %c0_i32, %c0_i32_0 : i32, i32
  }
  func.func @transform_3(%arg0: i32) -> (i32, i32) {
    %c0_i32 = arith.constant 0 : i32
    %c0_i32_0 = arith.constant 0 : i32
    %c0_i32_1 = arith.constant 0 : i32
    return %c0_i32, %c0_i32_0 : i32, i32
  }
  func.func @transform_4(%arg0: i32) -> (i32, i32) {
    %c0_i32 = arith.constant 0 : i32
    %c0_i32_0 = arith.constant 0 : i32
    %c0_i32_1 = arith.constant 0 : i32
    return %c0_i32, %c0_i32_0 : i32, i32
  }
  func.func @transform_5(%arg0: i32) -> (i32, i32) {
    %c0_i32 = arith.constant 0 : i32
    %c0_i32_0 = arith.constant 0 : i32
    %c0_i32_1 = arith.constant 0 : i32
    return %c0_i32, %c0_i32_0 : i32, i32
  }
  func.func @transform_6(%arg0: i32) -> (i32, i32) {
    %c0_i32 = arith.constant 0 : i32
    %c0_i32_0 = arith.constant 0 : i32
    %c0_i32_1 = arith.constant 0 : i32
    return %c0_i32, %c0_i32_0 : i32, i32
  }
  func.func @transform_7(%arg0: i32) -> (i32, i32) {
    %c0_i32 = arith.constant 0 : i32
    %c0_i32_0 = arith.constant 0 : i32
    %c0_i32_1 = arith.constant 0 : i32
    return %c0_i32, %c0_i32_0 : i32, i32
  }
  func.func @transform_8(%arg0: i32) -> (i32, i32) {
    %c0_i32 = arith.constant 0 : i32
    %c0_i32_0 = arith.constant 0 : i32
    %c0_i32_1 = arith.constant 0 : i32
    return %c0_i32, %c0_i32_0 : i32, i32
  }
  func.func @transform_9(%arg0: i32) -> (i32, i32) {
    %c0_i32 = arith.constant 0 : i32
    %c0_i32_0 = arith.constant 0 : i32
    %c0_i32_1 = arith.constant 0 : i32
    return %c0_i32, %c0_i32_0 : i32, i32
  }
  func.func @transform_10(%arg0: i32) -> (i32, i32) {
    %c0_i32 = arith.constant 0 : i32
    %c0_i32_0 = arith.constant 0 : i32
    %c0_i32_1 = arith.constant 0 : i32
    return %c0_i32, %c0_i32_0 : i32, i32
  }
  func.func @transform_11(%arg0: i32) -> (i32, i32) {
    %c0_i32 = arith.constant 0 : i32
    %c0_i32_0 = arith.constant 0 : i32
    %c0_i32_1 = arith.constant 0 : i32
    return %c0_i32, %c0_i32_0 : i32, i32
  }
  func.func @transform_12(%arg0: i32) -> (i32, i32) {
    %c0_i32 = arith.constant 0 : i32
    %c0_i32_0 = arith.constant 0 : i32
    %c0_i32_1 = arith.constant 0 : i32
    return %c0_i32, %c0_i32_0 : i32, i32
  }
  func.func @transform_13(%arg0: i32) -> (i32, i32) {
    %c0_i32 = arith.constant 0 : i32
    %c0_i32_0 = arith.constant 0 : i32
    return %arg0, %c0_i32 : i32, i32
  }
}

</mosaic_0001>

<llo_original>
// kernel: tpu_custom_call.1
$region0: #{tpu_custom_call.1}
  #allocation0 [shape = 'u32[]', space=smem, size = 0x4, offset = 0x4, fixed_abs, tag = 'smem constant byte address 0x4 - core index']
  #allocation1 [shape = 'u32[72,128]{1,0:T(1,128)}', space=vmem, size = 0x9000, scoped, tag = 'internal scratch']
  %s0 = inlined_call_operand.vmem [shape: bf16[32,16], index: 0, kind: input, shape index: {}]
  %s1 = inlined_call_operand.vmem [shape: bf16[32,32], index: 1, kind: input, shape index: {}]
  %s2 = inlined_call_operand.vmem [shape: bf16[16,32], index: 2, kind: input, shape index: {}]
  %s3 = inlined_call_operand.vmem [shape: f32[1,32], index: 3, kind: input, shape index: {}]
  %s4 = inlined_call_operand.vmem [shape: bf16[32,16], index: 4, kind: input, shape index: {}]
  %s5 = inlined_call_operand.vmem [shape: f32[1,16], index: 5, kind: input, shape index: {}]
  %s6 = inlined_call_operand.vmem [shape: bf16[32,64], index: 6, kind: input, shape index: {}]
  %s7 = inlined_call_operand.hbm [shape: bf16[16,64], index: 7, kind: input, shape index: {}]
  %s8 = inlined_call_operand.vmem [shape: f32[1,64], index: 8, kind: input, shape index: {}]
  %s9 = inlined_call_operand.vmem [shape: bf16[64,64], index: 9, kind: input, shape index: {}]
  %s10 = inlined_call_operand.vmem [shape: f32[1,64], index: 10, kind: input, shape index: {}]
  %s11 = inlined_call_operand.vmem [shape: bf16[64,16], index: 11, kind: input, shape index: {}]
  %s12 = inlined_call_operand.vmem [shape: f32[1,16], index: 12, kind: input, shape index: {}]
  %s13 = inlined_call_operand.vmem [shape: f32[32,16], index: 13, kind: output, shape index: {}]
  %s14 = sld [smem:[#allocation0]]
  $region89: #{tpu_custom_call.1} parent=0
    _
  %s16 = ssub.s32 1, %s14
  %s17 = scalar_select 0, %s16, %s14
  $region1: #{tpu_custom_call.1} parent=0
    #allocation2 [shape = 'u8[4096]{0}', space=vmem, size = 0x1000, scoped, tag = 'input window, operand 7, single buffered']
    #allocation3 [shape = 's32[2]{0}', space=sflag, size = 0x8, scoped, tag = 'scoped memory for tpu_custom_call.1']
    %18 = vsyncpa [#allocation3], 0
    loop: start=0, step=1, limit=4
    $region2: #{tpu_custom_call.1} parent=1 // loop_pre_header
      _
    $region3: #{tpu_custom_call.1} parent=1 // loop_header
      %s20 = sphi 0, %s24
      %p21 = scmp.ge.s32.totalorder %s20, 4
      %s30 = sphi 0, %s32
      %s33 = sphi 0, %s30
      %s34 = sphi 0, %s33
      %s50 = sphi 0, %s34
      %s56 = sphi 0, %s58
      %s59 = sphi 0, %s56
      %s60 = sphi 0, %s59
      %s76 = sphi 0, %s60
      %s80 = sphi 0, %s80
      %s82 = sphi 0, %s80
      %s83 = sphi 0, %s82
      %s97 = sphi 0, %s83
      %s101 = sphi 0, %s101
      %s103 = sphi 0, %s101
      %s104 = sphi 0, %s103
      %s118 = sphi 0, %s104
      %s122 = sphi 0, %s122
      %s124 = sphi 0, %s122
      %s125 = sphi 0, %s124
      %s139 = sphi 0, %s125
      %s143 = sphi 0, %s143
      %s145 = sphi 0, %s143
      %s146 = sphi 0, %s145
      %s160 = sphi 0, %s146
      %s164 = sphi 0, %s164
      %s166 = sphi 0, %s164
      %s167 = sphi 0, %s166
      %s181 = sphi 0, %s167
      %s185 = sphi 0, %s185
      %s187 = sphi 0, %s185
      %s188 = sphi 0, %s187
      %s202 = sphi 0, %s188
      %s206 = sphi 0, %s206
      %s208 = sphi 0, %s206
      %s209 = sphi 0, %s208
      %s223 = sphi 0, %s209
      %s227 = sphi 0, %s227
      %s229 = sphi 0, %s227
      %s230 = sphi 0, %s229
      %s244 = sphi 0, %s230
      %s248 = sphi 0, %s248
      %s250 = sphi 0, %s248
      %s251 = sphi 0, %s250
      %s265 = sphi 0, %s251
      %s269 = sphi 0, %s269
      %s271 = sphi 0, %s269
      %s272 = sphi 0, %s271
      %s286 = sphi 0, %s272
      %s290 = sphi 0, %s290
      %s292 = sphi 0, %s290
      %s293 = sphi 0, %s292
      %s307 = sphi 0, %s293
      %s313 = sphi 0, %s315
      %s316 = sphi 0, %s313
      %s317 = sphi 0, %s316
      %s333 = sphi 0, %s317
    $region4: #{tpu_custom_call.1} parent=1 // loop_header_branch
      %23 = sbr.rel (%p21) target = $region8
    $region5: #{tpu_custom_call.1} parent=1 // loop_body
      %s25 = ssub.s32 %s20, 1
      %s26 = ssub.s32 %s20, 2
      %s27 = sadd.s32 %s20, 1
      %s28 = ssub.s32 %s20, %s27
      %p29 = scmp.eq.s32.totalorder %s28, 0
      %s31 = sadd.s32 %s30, 1
      %s32 = scalar_select %p29, %s30, %s31
      %p35 = pneg %p29
      %p36 = scmp.eq.s32.totalorder %s20, 1
      %p37 = por %p35, %p36
      %p38 = scmp.ne.s32.totalorder %s30, %s33
      %p39 = scmp.eq.s32.totalorder %s20, 0
      %p40 = por %p38, %p39
      %p41 = scmp.ne.s32.totalorder %s30, %s33
      %p42 = scmp.eq.s32.totalorder %s25, 1
      %p43 = por %p41, %p42
      %p44 = scmp.ne.s32.totalorder %s33, %s34
      %p45 = scmp.eq.s32.totalorder %s25, 0
      %p46 = por %p44, %p45
      %p47 = scmp.ne.s32.totalorder %s33, %s34
      %p48 = scmp.eq.s32.totalorder %s26, 1
      %p49 = por %p47, %p48
      %p51 = scmp.ne.s32.totalorder %s34, %s50
      %p52 = scmp.eq.s32.totalorder %s26, 0
      %p53 = por %p51, %p52
      %s54 = ssub.s32 %s20, %s27
      %p55 = scmp.eq.s32.totalorder %s54, 0
      %s57 = sadd.s32 %s56, 1
      %s58 = scalar_select %p55, %s56, %s57
      %p61 = pneg %p55
      %p62 = scmp.eq.s32.totalorder %s20, 1
      %p63 = por %p61, %p62
      %p64 = scmp.ne.s32.totalorder %s56, %s59
      %p65 = scmp.eq.s32.totalorder %s20, 0
      %p66 = por %p64, %p65
      %p67 = scmp.ne.s32.totalorder %s56, %s59
      %p68 = scmp.eq.s32.totalorder %s25, 1
      %p69 = por %p67, %p68
      %p70 = scmp.ne.s32.totalorder %s59, %s60
      %p71 = scmp.eq.s32.totalorder %s25, 0
      %p72 = por %p70, %p71
      %p73 = scmp.ne.s32.totalorder %s59, %s60
      %p74 = scmp.eq.s32.totalorder %s26, 1
      %p75 = por %p73, %p74
      %p77 = scmp.ne.s32.totalorder %s60, %s76
      %p78 = scmp.eq.s32.totalorder %s26, 0
      %p79 = por %p77, %p78
      %s81 = sadd.s32 %s80, 1
      %p84 = scmp.eq.s32.totalorder %s20, 1
      %p85 = scmp.ne.s32.totalorder %s80, %s82
      %p86 = scmp.eq.s32.totalorder %s20, 0
      %p87 = por %p85, %p86
      %p88 = scmp.ne.s32.totalorder %s80, %s82
      %p89 = scmp.eq.s32.totalorder %s25, 1
      %p90 = por %p88, %p89
      %p91 = scmp.ne.s32.totalorder %s82, %s83
      %p92 = scmp.eq.s32.totalorder %s25, 0
      %p93 = por %p91, %p92
      %p94 = scmp.ne.s32.totalorder %s82, %s83
      %p95 = scmp.eq.s32.totalorder %s26, 1
      %p96 = por %p94, %p95
      %p98 = scmp.ne.s32.totalorder %s83, %s97
      %p99 = scmp.eq.s32.totalorder %s26, 0
      %p100 = por %p98, %p99
      %s102 = sadd.s32 %s101, 1
      %p105 = scmp.eq.s32.totalorder %s20, 1
      %p106 = scmp.ne.s32.totalorder %s101, %s103
      %p107 = scmp.eq.s32.totalorder %s20, 0
      %p108 = por %p106, %p107
      %p109 = scmp.ne.s32.totalorder %s101, %s103
      %p110 = scmp.eq.s32.totalorder %s25, 1
      %p111 = por %p109, %p110
      %p112 = scmp.ne.s32.totalorder %s103, %s104
      %p113 = scmp.eq.s32.totalorder %s25, 0
      %p114 = por %p112, %p113
      %p115 = scmp.ne.s32.totalorder %s103, %s104
      %p116 = scmp.eq.s32.totalorder %s26, 1
      %p117 = por %p115, %p116
      %p119 = scmp.ne.s32.totalorder %s104, %s118
      %p120 = scmp.eq.s32.totalorder %s26, 0
      %p121 = por %p119, %p120
      %s123 = sadd.s32 %s122, 1
      %p126 = scmp.eq.s32.totalorder %s20, 1
      %p127 = scmp.ne.s32.totalorder %s122, %s124
      %p128 = scmp.eq.s32.totalorder %s20, 0
      %p129 = por %p127, %p128
      %p130 = scmp.ne.s32.totalorder %s122, %s124
      %p131 = scmp.eq.s32.totalorder %s25, 1
      %p132 = por %p130, %p131
      %p133 = scmp.ne.s32.totalorder %s124, %s125
      %p134 = scmp.eq.s32.totalorder %s25, 0
      %p135 = por %p133, %p134
      %p136 = scmp.ne.s32.totalorder %s124, %s125
      %p137 = scmp.eq.s32.totalorder %s26, 1
      %p138 = por %p136, %p137
      %p140 = scmp.ne.s32.totalorder %s125, %s139
      %p141 = scmp.eq.s32.totalorder %s26, 0
      %p142 = por %p140, %p141
      %s144 = sadd.s32 %s143, 1
      %p147 = scmp.eq.s32.totalorder %s20, 1
      %p148 = scmp.ne.s32.totalorder %s143, %s145
      %p149 = scmp.eq.s32.totalorder %s20, 0
      %p150 = por %p148, %p149
      %p151 = scmp.ne.s32.totalorder %s143, %s145
      %p152 = scmp.eq.s32.totalorder %s25, 1
      %p153 = por %p151, %p152
      %p154 = scmp.ne.s32.totalorder %s145, %s146
      %p155 = scmp.eq.s32.totalorder %s25, 0
      %p156 = por %p154, %p155
      %p157 = scmp.ne.s32.totalorder %s145, %s146
      %p158 = scmp.eq.s32.totalorder %s26, 1
      %p159 = por %p157, %p158
      %p161 = scmp.ne.s32.totalorder %s146, %s160
      %p162 = scmp.eq.s32.totalorder %s26, 0
      %p163 = por %p161, %p162
      %s165 = sadd.s32 %s164, 1
      %p168 = scmp.eq.s32.totalorder %s20, 1
      %p169 = scmp.ne.s32.totalorder %s164, %s166
      %p170 = scmp.eq.s32.totalorder %s20, 0
      %p171 = por %p169, %p170
      %p172 = scmp.ne.s32.totalorder %s164, %s166
      %p173 = scmp.eq.s32.totalorder %s25, 1
      %p174 = por %p172, %p173
      %p175 = scmp.ne.s32.totalorder %s166, %s167
      %p176 = scmp.eq.s32.totalorder %s25, 0
      %p177 = por %p175, %p176
      %p178 = scmp.ne.s32.totalorder %s166, %s167
      %p179 = scmp.eq.s32.totalorder %s26, 1
      %p180 = por %p178, %p179
      %p182 = scmp.ne.s32.totalorder %s167, %s181
      %p183 = scmp.eq.s32.totalorder %s26, 0
      %p184 = por %p182, %p183
      %s186 = sadd.s32 %s185, 1
      %p189 = scmp.eq.s32.totalorder %s20, 1
      %p190 = scmp.ne.s32.totalorder %s185, %s187
      %p191 = scmp.eq.s32.totalorder %s20, 0
      %p192 = por %p190, %p191
      %p193 = scmp.ne.s32.totalorder %s185, %s187
      %p194 = scmp.eq.s32.totalorder %s25, 1
      %p195 = por %p193, %p194
      %p196 = scmp.ne.s32.totalorder %s187, %s188
      %p197 = scmp.eq.s32.totalorder %s25, 0
      %p198 = por %p196, %p197
      %p199 = scmp.ne.s32.totalorder %s187, %s188
      %p200 = scmp.eq.s32.totalorder %s26, 1
      %p201 = por %p199, %p200
      %p203 = scmp.ne.s32.totalorder %s188, %s202
      %p204 = scmp.eq.s32.totalorder %s26, 0
      %p205 = por %p203, %p204
      %s207 = sadd.s32 %s206, 1
      %p210 = scmp.eq.s32.totalorder %s20, 1
      %p211 = scmp.ne.s32.totalorder %s206, %s208
      %p212 = scmp.eq.s32.totalorder %s20, 0
      %p213 = por %p211, %p212
      %p214 = scmp.ne.s32.totalorder %s206, %s208
      %p215 = scmp.eq.s32.totalorder %s25, 1
      %p216 = por %p214, %p215
      %p217 = scmp.ne.s32.totalorder %s208, %s209
      %p218 = scmp.eq.s32.totalorder %s25, 0
      %p219 = por %p217, %p218
      %p220 = scmp.ne.s32.totalorder %s208, %s209
      %p221 = scmp.eq.s32.totalorder %s26, 1
      %p222 = por %p220, %p221
      %p224 = scmp.ne.s32.totalorder %s209, %s223
      %p225 = scmp.eq.s32.totalorder %s26, 0
      %p226 = por %p224, %p225
      %s228 = sadd.s32 %s227, 1
      %p231 = scmp.eq.s32.totalorder %s20, 1
      %p232 = scmp.ne.s32.totalorder %s227, %s229
      %p233 = scmp.eq.s32.totalorder %s20, 0
      %p234 = por %p232, %p233
      %p235 = scmp.ne.s32.totalorder %s227, %s229
      %p236 = scmp.eq.s32.totalorder %s25, 1
      %p237 = por %p235, %p236
      %p238 = scmp.ne.s32.totalorder %s229, %s230
      %p239 = scmp.eq.s32.totalorder %s25, 0
      %p240 = por %p238, %p239
      %p241 = scmp.ne.s32.totalorder %s229, %s230
      %p242 = scmp.eq.s32.totalorder %s26, 1
      %p243 = por %p241, %p242
      %p245 = scmp.ne.s32.totalorder %s230, %s244
      %p246 = scmp.eq.s32.totalorder %s26, 0
      %p247 = por %p245, %p246
      %s249 = sadd.s32 %s248, 1
      %p252 = scmp.eq.s32.totalorder %s20, 1
      %p253 = scmp.ne.s32.totalorder %s248, %s250
      %p254 = scmp.eq.s32.totalorder %s20, 0
      %p255 = por %p253, %p254
      %p256 = scmp.ne.s32.totalorder %s248, %s250
      %p257 = scmp.eq.s32.totalorder %s25, 1
      %p258 = por %p256, %p257
      %p259 = scmp.ne.s32.totalorder %s250, %s251
      %p260 = scmp.eq.s32.totalorder %s25, 0
      %p261 = por %p259, %p260
      %p262 = scmp.ne.s32.totalorder %s250, %s251
      %p263 = scmp.eq.s32.totalorder %s26, 1
      %p264 = por %p262, %p263
      %p266 = scmp.ne.s32.totalorder %s251, %s265
      %p267 = scmp.eq.s32.totalorder %s26, 0
      %p268 = por %p266, %p267
      %s270 = sadd.s32 %s269, 1
      %p273 = scmp.eq.s32.totalorder %s20, 1
      %p274 = scmp.ne.s32.totalorder %s269, %s271
      %p275 = scmp.eq.s32.totalorder %s20, 0
      %p276 = por %p274, %p275
      %p277 = scmp.ne.s32.totalorder %s269, %s271
      %p278 = scmp.eq.s32.totalorder %s25, 1
      %p279 = por %p277, %p278
      %p280 = scmp.ne.s32.totalorder %s271, %s272
      %p281 = scmp.eq.s32.totalorder %s25, 0
      %p282 = por %p280, %p281
      %p283 = scmp.ne.s32.totalorder %s271, %s272
      %p284 = scmp.eq.s32.totalorder %s26, 1
      %p285 = por %p283, %p284
      %p287 = scmp.ne.s32.totalorder %s272, %s286
      %p288 = scmp.eq.s32.totalorder %s26, 0
      %p289 = por %p287, %p288
      %s291 = sadd.s32 %s290, 1
      %p294 = scmp.eq.s32.totalorder %s20, 1
      %p295 = scmp.ne.s32.totalorder %s290, %s292
      %p296 = scmp.eq.s32.totalorder %s20, 0
      %p297 = por %p295, %p296
      %p298 = scmp.ne.s32.totalorder %s290, %s292
      %p299 = scmp.eq.s32.totalorder %s25, 1
      %p300 = por %p298, %p299
      %p301 = scmp.ne.s32.totalorder %s292, %s293
      %p302 = scmp.eq.s32.totalorder %s25, 0
      %p303 = por %p301, %p302
      %p304 = scmp.ne.s32.totalorder %s292, %s293
      %p305 = scmp.eq.s32.totalorder %s26, 1
      %p306 = por %p304, %p305
      %p308 = scmp.ne.s32.totalorder %s293, %s307
      %p309 = scmp.eq.s32.totalorder %s26, 0
      %p310 = por %p308, %p309
      %s311 = ssub.s32 %s20, %s27
      %p312 = scmp.eq.s32.totalorder %s311, 0
      %s314 = sadd.s32 %s313, 1
      %s315 = scalar_select %p312, %s313, %s314
      %p318 = pneg %p312
      %p319 = scmp.eq.s32.totalorder %s20, 1
      %p320 = por %p318, %p319
      %p321 = scmp.ne.s32.totalorder %s313, %s316
      %p322 = scmp.eq.s32.totalorder %s20, 0
      %p323 = por %p321, %p322
      %p324 = scmp.ne.s32.totalorder %s313, %s316
      %p325 = scmp.eq.s32.totalorder %s25, 1
      %p326 = por %p324, %p325
      %p327 = scmp.ne.s32.totalorder %s316, %s317
      %p328 = scmp.eq.s32.totalorder %s25, 0
      %p329 = por %p327, %p328
      %p330 = scmp.ne.s32.totalorder %s316, %s317
      %p331 = scmp.eq.s32.totalorder %s26, 1
      %p332 = por %p330, %p331
      %p334 = scmp.ne.s32.totalorder %s317, %s333
      %p335 = scmp.eq.s32.totalorder %s26, 0
      %p336 = por %p334, %p335
      %p337 = scmp.le.s32.totalorder 1, %s20
      %p338 = scmp.lt.s32.totalorder %s20, 3
      %p339 = pnand %p337, %p338
      %p340 = pneg %p339
      // Predicated region
      $region9: #{tpu_custom_call.1} parent=5 // pred_check
        _
      $region10: #{tpu_custom_call.1} parent=5 // pred_check_branch
        %342 = sbr.rel (%p339) target = $region12
      $region11: #{tpu_custom_call.1} parent=5 // pred_region
        %s343 = ssub.s32 %s20, 1
        // Predicated region
        $region13: #{tpu_custom_call.1} parent=11 // pred_check
          %p344 = pneg %p93
        $region14: #{tpu_custom_call.1} parent=11 // pred_check_branch
          %346 = sbr.rel (%p344) target = $region16
        $region15: #{tpu_custom_call.1} parent=11 // pred_region
          _
        $region16: #{tpu_custom_call.1} parent=11 // pred_fallthru
          _
        // Predicated region
        $region17: #{tpu_custom_call.1} parent=11 // pred_check
          %p347 = pneg %p114
        $region18: #{tpu_custom_call.1} parent=11 // pred_check_branch
          %349 = sbr.rel (%p347) target = $region20
        $region19: #{tpu_custom_call.1} parent=11 // pred_region
          _
        $region20: #{tpu_custom_call.1} parent=11 // pred_fallthru
          _
        // Predicated region
        $region21: #{tpu_custom_call.1} parent=11 // pred_check
          %p350 = pneg %p135
        $region22: #{tpu_custom_call.1} parent=11 // pred_check_branch
          %352 = sbr.rel (%p350) target = $region24
        $region23: #{tpu_custom_call.1} parent=11 // pred_region
          _
        $region24: #{tpu_custom_call.1} parent=11 // pred_fallthru
          _
        // Predicated region
        $region25: #{tpu_custom_call.1} parent=11 // pred_check
          %p353 = pneg %p156
        $region26: #{tpu_custom_call.1} parent=11 // pred_check_branch
          %355 = sbr.rel (%p353) target = $region28
        $region27: #{tpu_custom_call.1} parent=11 // pred_region
          _
        $region28: #{tpu_custom_call.1} parent=11 // pred_fallthru
          _
        // Predicated region
        $region29: #{tpu_custom_call.1} parent=11 // pred_check
          %p356 = pneg %p177
        $region30: #{tpu_custom_call.1} parent=11 // pred_check_branch
          %358 = sbr.rel (%p356) target = $region32
        $region31: #{tpu_custom_call.1} parent=11 // pred_region
          _
        $region32: #{tpu_custom_call.1} parent=11 // pred_fallthru
          _
        // Predicated region
        $region33: #{tpu_custom_call.1} parent=11 // pred_check
          %p359 = pneg %p198
        $region34: #{tpu_custom_call.1} parent=11 // pred_check_branch
          %361 = sbr.rel (%p359) target = $region36
        $region35: #{tpu_custom_call.1} parent=11 // pred_region
          %363 = vsyncadd [#allocation3], 0
          %s364 = sshll.u32 %s7, 4
          %s365 = int_to_ptr.hbm [resolvable:$true] %s364
          %s366 = sshll.u32 [#allocation2], 4
          %s367 = int_to_ptr.vmem [resolvable:$true] %s366
          %372 = dma.hbm_to_vmem [thread:$0]  %s365, 128, %s367, [#allocation3], 64, 64, 4
        $region36: #{tpu_custom_call.1} parent=11 // pred_fallthru
          _
        // Predicated region
        $region37: #{tpu_custom_call.1} parent=11 // pred_check
          %p373 = pneg %p219
        $region38: #{tpu_custom_call.1} parent=11 // pred_check_branch
          %375 = sbr.rel (%p373) target = $region40
        $region39: #{tpu_custom_call.1} parent=11 // pred_region
          _
        $region40: #{tpu_custom_call.1} parent=11 // pred_fallthru
          _
        // Predicated region
        $region41: #{tpu_custom_call.1} parent=11 // pred_check
          %p376 = pneg %p240
        $region42: #{tpu_custom_call.1} parent=11 // pred_check_branch
          %378 = sbr.rel (%p376) target = $region44
        $region43: #{tpu_custom_call.1} parent=11 // pred_region
          _
        $region44: #{tpu_custom_call.1} parent=11 // pred_fallthru
          _
        // Predicated region
        $region45: #{tpu_custom_call.1} parent=11 // pred_check
          %p379 = pneg %p261
        $region46: #{tpu_custom_call.1} parent=11 // pred_check_branch
          %381 = sbr.rel (%p379) target = $region48
        $region47: #{tpu_custom_call.1} parent=11 // pred_region
          _
        $region48: #{tpu_custom_call.1} parent=11 // pred_fallthru
          _
        // Predicated region
        $region49: #{tpu_custom_call.1} parent=11 // pred_check
          %p382 = pneg %p282
        $region50: #{tpu_custom_call.1} parent=11 // pred_check_branch
          %384 = sbr.rel (%p382) target = $region52
        $region51: #{tpu_custom_call.1} parent=11 // pred_region
          _
        $region52: #{tpu_custom_call.1} parent=11 // pred_fallthru
          _
        // Predicated region
        $region53: #{tpu_custom_call.1} parent=11 // pred_check
          %p385 = pneg %p303
        $region54: #{tpu_custom_call.1} parent=11 // pred_check_branch
          %387 = sbr.rel (%p385) target = $region56
        $region55: #{tpu_custom_call.1} parent=11 // pred_region
          _
        $region56: #{tpu_custom_call.1} parent=11 // pred_fallthru
          _
      $region12: #{tpu_custom_call.1} parent=5 // pred_fallthru
        _
      %p388 = scmp.lt.s32.totalorder %s20, 2
      // Predicated region
      $region57: #{tpu_custom_call.1} parent=5 // pred_check
        %p389 = pneg %p388
      $region58: #{tpu_custom_call.1} parent=5 // pred_check_branch
        %391 = sbr.rel (%p389) target = $region60
      $region59: #{tpu_custom_call.1} parent=5 // pred_region
        // Predicated region
        $region61: #{tpu_custom_call.1} parent=59 // pred_check
          %p392 = pneg %p40
        $region62: #{tpu_custom_call.1} parent=59 // pred_check_branch
          %394 = sbr.rel (%p392) target = $region64
        $region63: #{tpu_custom_call.1} parent=59 // pred_region
          %s395 = smul.u32 2, %s20
          %p396 = scmp.lt.s32.totalorder %s395, 3
          %s397 = scalar_select %p396, %s395, 3
          %s398 = smul.addr %s397, 4
          %s399 = scalar_lea.vmem %s0, %s398
          %s400 = smul.u32 2, %s20
        $region64: #{tpu_custom_call.1} parent=59 // pred_fallthru
          _
        // Predicated region
        $region65: #{tpu_custom_call.1} parent=59 // pred_check
          %p401 = pneg %p66
        $region66: #{tpu_custom_call.1} parent=59 // pred_check_branch
          %403 = sbr.rel (%p401) target = $region68
        $region67: #{tpu_custom_call.1} parent=59 // pred_region
          %s404 = smul.u32 2, %s20
          %p405 = scmp.lt.s32.totalorder %s404, 3
          %s406 = scalar_select %p405, %s404, 3
          %s407 = smul.addr %s406, 4
          %s408 = scalar_lea.vmem %s1, %s407
          %s409 = smul.u32 2, %s20
        $region68: #{tpu_custom_call.1} parent=59 // pred_fallthru
          _
      $region60: #{tpu_custom_call.1} parent=5 // pred_fallthru
        _
      %p410 = scmp.le.s32.totalorder 1, %s20
      %p411 = scmp.lt.s32.totalorder %s20, 3
      %p412 = pnand %p410, %p411
      %p413 = pneg %p412
      // Predicated region
      $region69: #{tpu_custom_call.1} parent=5 // pred_check
        _
      $region70: #{tpu_custom_call.1} parent=5 // pred_check_branch
        %415 = sbr.rel (%p412) target = $region72
      $region71: #{tpu_custom_call.1} parent=5 // pred_region
        %s416 = ssub.s32 %s20, 1
        // Predicated region
        $region73: #{tpu_custom_call.1} parent=71 // pred_check
          %p417 = pneg %p198
        $region74: #{tpu_custom_call.1} parent=71 // pred_check_branch
          %419 = sbr.rel (%p417) target = $region76
        $region75: #{tpu_custom_call.1} parent=71 // pred_region
          %421 = dma.done [#allocation3], 128
        $region76: #{tpu_custom_call.1} parent=71 // pred_fallthru
          _
        %s422 = smul.u32 2, %s25
        %p423 = scmp.lt.s32.totalorder %s422, 3
        %s424 = scalar_select %p423, %s422, 3
        %s425 = smul.addr %s424, 4
        %s426 = scalar_lea.vmem %s0, %s425
        %p427 = pneg %p46
        %p428 = pneg %p43
        %s429 = smul.u32 2, %s25
        %p430 = scmp.lt.s32.totalorder %s429, 3
        %s431 = scalar_select %p430, %s429, 3
        %s432 = smul.addr %s431, 4
        %s433 = scalar_lea.vmem %s1, %s432
        %p434 = pneg %p72
        %p435 = pneg %p69
        %p436 = pneg %p93
        %p437 = pneg %p90
        %p438 = pneg %p114
        %p439 = pneg %p111
        %p440 = pneg %p135
        %p441 = pneg %p132
        %p442 = pneg %p156
        %p443 = pneg %p153
        %p444 = pneg %p177
        %p445 = pneg %p174
        %p446 = pneg %p198
        %p447 = pneg %p195
        %p448 = pneg %p219
        %p449 = pneg %p216
        %p450 = pneg %p240
        %p451 = pneg %p237
        %p452 = pneg %p261
        %p453 = pneg %p258
        %p454 = pneg %p282
        %p455 = pneg %p279
        %p456 = pneg %p303
        %p457 = pneg %p300
        %p458 = pneg %p329
        %p459 = pneg %p326
        %s460 = smul.u32 2, %s25
        %p461 = scmp.lt.s32.totalorder %s460, 3
        %s462 = scalar_select %p461, %s460, 3
        %s463 = smul.addr %s462, 8
        %s464 = scalar_lea.vmem %s13, %s463
        %s465 = smul.u32 2, %s25
        %p466 = scmp.lt.s32.totalorder %s465, 3
        %s467 = scalar_select %p466, %s465, 3
        %s468 = smul.addr %s467, 4
        %s469 = scalar_lea.vmem %s0, %s468
        %s470 = smul.u32 2, %s25
        %s471 = smul.u32 2, %s25
        %p472 = scmp.lt.s32.totalorder %s471, 3
        %s473 = scalar_select %p472, %s471, 3
        %s474 = smul.addr %s473, 4
        %s475 = scalar_lea.vmem %s1, %s474
        %s476 = smul.u32 2, %s25
        %s477 = smul.u32 2, %s25
        %p478 = scmp.lt.s32.totalorder %s477, 3
        %s479 = scalar_select %p478, %s477, 3
        %s480 = smul.addr %s479, 8
        %s481 = scalar_lea.vmem %s13, %s480
        %s482 = smul.u32 2, %s25
        %v484 = vld [vmem:[%s2] sm:$0xf]
        %v485 = vld [vmem:[%s2 + $0x4] sm:$0xf]
        %v486 = vld [vmem:[%s3] sm:$0x1]
        %v487 = vld [vmem:[%s4] sm:$0xf]
        %v488 = vld [vmem:[%s4 + $0x4] sm:$0xf]
        %v489 = vld [vmem:[%s4 + $0x8] sm:$0xf]
        %v490 = vld [vmem:[%s4 + $0xc] sm:$0xf]
        %v491 = vld [vmem:[%s5] sm:$0x1]
        %v492 = vld [vmem:[%s6] sm:$0xf]
        %v493 = vld [vmem:[%s6 + $0x4] sm:$0xf]
        %v494 = vld [vmem:[%s6 + $0x8] sm:$0xf]
        %v495 = vld [vmem:[%s6 + $0xc] sm:$0xf]
        %v496 = vld [vmem:[#allocation2] sm:$0xf]
        %v497 = vld [vmem:[#allocation2 + $0x4] sm:$0xf]
        %v498 = vld [vmem:[%s8] sm:$0x1]
        %v499 = vld [vmem:[%s9] sm:$0xf]
        %v500 = vld [vmem:[%s9 + $0x4] sm:$0xf]
        %v501 = vld [vmem:[%s9 + $0x8] sm:$0xf]
        %v502 = vld [vmem:[%s9 + $0xc] sm:$0xf]
        %v503 = vld [vmem:[%s9 + $0x10] sm:$0xf]
        %v504 = vld [vmem:[%s9 + $0x14] sm:$0xf]
        %v505 = vld [vmem:[%s9 + $0x18] sm:$0xf]
        %v506 = vld [vmem:[%s9 + $0x1c] sm:$0xf]
        %v507 = vld [vmem:[%s10] sm:$0x1]
        %v508 = vld [vmem:[%s11] sm:$0xf]
        %v509 = vld [vmem:[%s11 + $0x4] sm:$0xf]
        %v510 = vld [vmem:[%s11 + $0x8] sm:$0xf]
        %v511 = vld [vmem:[%s11 + $0xc] sm:$0xf]
        %v512 = vld [vmem:[%s11 + $0x10] sm:$0xf]
        %v513 = vld [vmem:[%s11 + $0x14] sm:$0xf]
        %v514 = vld [vmem:[%s11 + $0x18] sm:$0xf]
        %v515 = vld [vmem:[%s11 + $0x1c] sm:$0xf]
        %v516 = vld [vmem:[%s12] sm:$0x1]
        %v517 = vld [vmem:[%s469] sm:$0xf]
        %v518 = vld [vmem:[%s469 + $0x4] sm:$0xf]
        %v519 = vld [vmem:[%s475] sm:$0xf]
        %v520 = vld [vmem:[%s475 + $0x4] sm:$0xf]
        %v522 = vperm.slane %v486, 0
        %v526 = vunpack.c.l.b16 %v517
        %v527 = vunpack.c.l.b16 %v518
        %v528 = vpack.c.b16 %v527, %v526
        %v531 = vunpack.c.l.b16 %v484
        %v532 = vunpack.c.l.b16 %v485
        %v533 = vpack.c.b16 %v532, %v531
        %vm535 = vcmask 130048
        %v537 = vsel %vm535, %v528, 0
        %539 = vmatpush.bf16.msra.mxu0 0
        %540 = vmatpush.bf16.msra.mxu0 0
        %541 = vmatpush.bf16.msra.mxu0 0
        %542 = vmatpush.bf16.msra.mxu0 0
        %543 = vmatpush.bf16.msra.mxu0 0
        %544 = vmatpush.bf16.msra.mxu0 0
        %545 = vmatpush.bf16.msra.mxu0 0
        %546 = vmatpush.bf16.msra.mxu0 %v533
        %547 = vmatmul.bf16.gmra.mxu0 %v537
        %v548 = vpop.f32.mrf.mxu0
        %v549 = vadd.f32 %v522, %v548
        %v550 = vpop.f32.mrf.mxu0
        %v551 = vadd.f32 %v522, %v550
        %552 = vdwg.mxu0
        %v553 = vxor.u32 %v549, 2147483648
        %v554 = vxor.u32 %v551, 2147483648
        %v555 = vmul.f32 %v553, 1.442695
        %v556 = vpow.pop %v555
        %v557 = vmul.f32 %v554, 1.442695
        %v558 = vpow.pop %v557
        %v559 = vadd.f32 %v556, 1.0
        %v560 = vadd.f32 %v558, 1.0
        %v561 = vrcp.pop %v559
        %v562 = vmul.f32 %v559, %v561
        %v563 = vsub.f32 1.0, %v562
        %v564 = vmul.f32 %v561, %v563
        %v565 = vadd.f32 %v561, %v564
        %vm566 = vweird.f32 %v559
        %vm567 = vweird.f32 %v561
        %vm568 = vmor %vm566, %vm567
        %v569 = vsel %vm568, %v561, %v565
        %v570 = vand.u32 2147483647, %v559
        %vm571 = vcmp.eq.f32.partialorder %v570, 8.507059e+37
        %v572 = vand.u32 %v559, 2147483648
        %v573 = vor.u32 1.1754944e-38, %v572
        %v574 = vsel %vm571, %v573, %v569
        %v575 = vmul.f32 1.0, %v574
        %v576 = vrcp.pop %v560
        %v577 = vmul.f32 %v560, %v576
        %v578 = vsub.f32 1.0, %v577
        %v579 = vmul.f32 %v576, %v578
        %v580 = vadd.f32 %v576, %v579
        %vm581 = vweird.f32 %v560
        %vm582 = vweird.f32 %v576
        %vm583 = vmor %vm581, %vm582
        %v584 = vsel %vm583, %v576, %v580
        %v585 = vand.u32 2147483647, %v560
        %vm586 = vcmp.eq.f32.partialorder %v585, 8.507059e+37
        %v587 = vand.u32 %v560, 2147483648
        %v588 = vor.u32 1.1754944e-38, %v587
        %v589 = vsel %vm586, %v588, %v584
        %v590 = vmul.f32 1.0, %v589
        %v591 = vmul.f32 %v549, %v575
        %v592 = vmul.f32 %v551, %v590
        %v593 = vpack.c.bf16 %v592, %v591
        %v595 = vperm.slane %v491, 0
        %v601 = vunpack.c.l.b16 %v487
        %v602 = vunpack.c.l.b16 %v488
        %v603 = vunpack.c.l.b16 %v489
        %v604 = vunpack.c.l.b16 %v490
        %v605 = vpack.c.b16 %v602, %v601
        %v606 = vpack.c.b16 %v604, %v603
        %vm609 = vcmask 261120
        %v611 = vsel %vm609, %v593, 0
        %613 = vmatpush.bf16.msra.mxu0 0
        %614 = vmatpush.bf16.msra.mxu0 0
        %615 = vmatpush.bf16.msra.mxu0 0
        %616 = vmatpush.bf16.msra.mxu0 0
        %617 = vmatpush.bf16.msra.mxu0 0
        %618 = vmatpush.bf16.msra.mxu0 0
        %619 = vmatpush.bf16.msra.mxu0 %v606
        %620 = vmatpush.bf16.msra.mxu0 %v605
        %621 = vmatmul.bf16.gmra.mxu0 %v611
        %v622 = vpop.f32.mrf.mxu0
        %v623 = vadd.f32 %v595, %v622
        %v624 = vpop.f32.mrf.mxu0
        %v625 = vadd.f32 %v595, %v624
        %626 = vdwg.mxu0
        %v627 = vtanh.pop %v623
        %v628 = vtanh.pop %v625
        %v629 = vpack.c.bf16 %v628, %v627
        %v632 = vunpack.c.l.b16 %v496
        %v633 = vunpack.c.l.b16 %v497
        %v634 = vpack.c.b16 %v633, %v632
        %v637 = vsel %vm535, %v629, 0
        %639 = vmatpush.bf16.msra.mxu0 0
        %640 = vmatpush.bf16.msra.mxu0 0
        %641 = vmatpush.bf16.msra.mxu0 0
        %642 = vmatpush.bf16.msra.mxu0 0
        %643 = vmatpush.bf16.msra.mxu0 0
        %644 = vmatpush.bf16.msra.mxu0 0
        %645 = vmatpush.bf16.msra.mxu0 0
        %646 = vmatpush.bf16.msra.mxu0 %v634
        %647 = vmatmul.bf16.gmra.mxu0 %v637
        %v648 = vpop.f32.mrf.mxu0
        %v649 = vadd.f32 0.0, %v648
        %v650 = vpop.f32.mrf.mxu0
        %v651 = vadd.f32 0.0, %v650
        %652 = vdwg.mxu0
        %v655 = vunpack.c.l.b16 %v519
        %v656 = vunpack.c.l.b16 %v520
        %v657 = vpack.c.b16 %v656, %v655
        %v662 = vunpack.c.l.b16 %v492
        %v663 = vunpack.c.l.b16 %v493
        %v664 = vunpack.c.l.b16 %v494
        %v665 = vunpack.c.l.b16 %v495
        %v666 = vpack.c.b16 %v663, %v662
        %v667 = vpack.c.b16 %v665, %v664
        %v671 = vsel %vm609, %v657, 0
        %673 = vmatpush.bf16.msra.mxu0 0
        %674 = vmatpush.bf16.msra.mxu0 0
        %675 = vmatpush.bf16.msra.mxu0 0
        %676 = vmatpush.bf16.msra.mxu0 0
        %677 = vmatpush.bf16.msra.mxu0 0
        %678 = vmatpush.bf16.msra.mxu0 0
        %679 = vmatpush.bf16.msra.mxu0 %v667
        %680 = vmatpush.bf16.msra.mxu0 %v666
        %681 = vmatmul.bf16.gmra.mxu0 %v671
        %v682 = vpop.f32.mrf.mxu0
        %v683 = vadd.f32 %v649, %v682
        %v684 = vpop.f32.mrf.mxu0
        %v685 = vadd.f32 %v651, %v684
        %686 = vdwg.mxu0
        %v688 = vperm.slane %v498, 0
        %v690 = vadd.f32 %v683, %v688
        %v691 = vadd.f32 %v685, %v688
        %v692 = vxor.u32 %v690, 2147483648
        %v693 = vxor.u32 %v691, 2147483648
        %v694 = vmul.f32 %v692, 1.442695
        %v695 = vpow.pop %v694
        %v696 = vmul.f32 %v693, 1.442695
        %v697 = vpow.pop %v696
        %v698 = vadd.f32 %v695, 1.0
        %v699 = vadd.f32 %v697, 1.0
        %v700 = vrcp.pop %v698
        %v701 = vmul.f32 %v698, %v700
        %v702 = vsub.f32 1.0, %v701
        %v703 = vmul.f32 %v700, %v702
        %v704 = vadd.f32 %v700, %v703
        %vm705 = vweird.f32 %v698
        %vm706 = vweird.f32 %v700
        %vm707 = vmor %vm705, %vm706
        %v708 = vsel %vm707, %v700, %v704
        %v709 = vand.u32 2147483647, %v698
        %vm710 = vcmp.eq.f32.partialorder %v709, 8.507059e+37
        %v711 = vand.u32 %v698, 2147483648
        %v712 = vor.u32 1.1754944e-38, %v711
        %v713 = vsel %vm710, %v712, %v708
        %v714 = vmul.f32 1.0, %v713
        %v715 = vrcp.pop %v699
        %v716 = vmul.f32 %v699, %v715
        %v717 = vsub.f32 1.0, %v716
        %v718 = vmul.f32 %v715, %v717
        %v719 = vadd.f32 %v715, %v718
        %vm720 = vweird.f32 %v699
        %vm721 = vweird.f32 %v715
        %vm722 = vmor %vm720, %vm721
        %v723 = vsel %vm722, %v715, %v719
        %v724 = vand.u32 2147483647, %v699
        %vm725 = vcmp.eq.f32.partialorder %v724, 8.507059e+37
        %v726 = vand.u32 %v699, 2147483648
        %v727 = vor.u32 1.1754944e-38, %v726
        %v728 = vsel %vm725, %v727, %v723
        %v729 = vmul.f32 1.0, %v728
        %v730 = vmul.f32 %v690, %v714
        %v731 = vmul.f32 %v691, %v729
        %v732 = vpack.c.bf16 %v731, %v730
        %v734 = vperm.slane %v507, 0
        %v744 = vunpack.c.l.b16 %v499
        %v745 = vunpack.c.l.b16 %v500
        %v746 = vunpack.c.l.b16 %v501
        %v747 = vunpack.c.l.b16 %v502
        %v748 = vunpack.c.l.b16 %v503
        %v749 = vunpack.c.l.b16 %v504
        %v750 = vunpack.c.l.b16 %v505
        %v751 = vunpack.c.l.b16 %v506
        %v752 = vpack.c.b16 %v745, %v744
        %v753 = vpack.c.b16 %v747, %v746
        %v754 = vpack.c.b16 %v749, %v748
        %v755 = vpack.c.b16 %v751, %v750
        %vm760 = vcmask 523264
        %v762 = vsel %vm760, %v732, 0
        %764 = vmatpush.bf16.msra.mxu0 0
        %765 = vmatpush.bf16.msra.mxu0 0
        %766 = vmatpush.bf16.msra.mxu0 0
        %767 = vmatpush.bf16.msra.mxu0 0
        %768 = vmatpush.bf16.msra.mxu0 %v755
        %769 = vmatpush.bf16.msra.mxu0 %v754
        %770 = vmatpush.bf16.msra.mxu0 %v753
        %771 = vmatpush.bf16.msra.mxu0 %v752
        %772 = vmatmul.bf16.gmra.mxu0 %v762
        %v773 = vpop.f32.mrf.mxu0
        %v774 = vadd.f32 %v734, %v773
        %v775 = vpop.f32.mrf.mxu0
        %v776 = vadd.f32 %v734, %v775
        %777 = vdwg.mxu0
        %v778 = vxor.u32 %v774, 2147483648
        %v779 = vxor.u32 %v776, 2147483648
        %v780 = vmul.f32 %v778, 1.442695
        %v781 = vpow.pop %v780
        %v782 = vmul.f32 %v779, 1.442695
        %v783 = vpow.pop %v782
        %v784 = vadd.f32 %v781, 1.0
        %v785 = vadd.f32 %v783, 1.0
        %v786 = vrcp.pop %v784
        %v787 = vmul.f32 %v784, %v786
        %v788 = vsub.f32 1.0, %v787
        %v789 = vmul.f32 %v786, %v788
        %v790 = vadd.f32 %v786, %v789
        %vm791 = vweird.f32 %v784
        %vm792 = vweird.f32 %v786
        %vm793 = vmor %vm791, %vm792
        %v794 = vsel %vm793, %v786, %v790
        %v795 = vand.u32 2147483647, %v784
        %vm796 = vcmp.eq.f32.partialorder %v795, 8.507059e+37
        %v797 = vand.u32 %v784, 2147483648
        %v798 = vor.u32 1.1754944e-38, %v797
        %v799 = vsel %vm796, %v798, %v794
        %v800 = vmul.f32 1.0, %v799
        %v801 = vrcp.pop %v785
        %v802 = vmul.f32 %v785, %v801
        %v803 = vsub.f32 1.0, %v802
        %v804 = vmul.f32 %v801, %v803
        %v805 = vadd.f32 %v801, %v804
        %vm806 = vweird.f32 %v785
        %vm807 = vweird.f32 %v801
        %vm808 = vmor %vm806, %vm807
        %v809 = vsel %vm808, %v801, %v805
        %v810 = vand.u32 2147483647, %v785
        %vm811 = vcmp.eq.f32.partialorder %v810, 8.507059e+37
        %v812 = vand.u32 %v785, 2147483648
        %v813 = vor.u32 1.1754944e-38, %v812
        %v814 = vsel %vm811, %v813, %v809
        %v815 = vmul.f32 1.0, %v814
        %v816 = vmul.f32 %v774, %v800
        %v817 = vmul.f32 %v776, %v815
        %v818 = vpack.c.bf16 %v817, %v816
        %v820 = vperm.slane %v516, 0
        %v830 = vunpack.c.l.b16 %v508
        %v831 = vunpack.c.l.b16 %v509
        %v832 = vunpack.c.l.b16 %v510
        %v833 = vunpack.c.l.b16 %v511
        %v834 = vunpack.c.l.b16 %v512
        %v835 = vunpack.c.l.b16 %v513
        %v836 = vunpack.c.l.b16 %v514
        %v837 = vunpack.c.l.b16 %v515
        %v838 = vpack.c.b16 %v831, %v830
        %v839 = vpack.c.b16 %v833, %v832
        %v840 = vpack.c.b16 %v835, %v834
        %v841 = vpack.c.b16 %v837, %v836
        %v847 = vsel %vm760, %v818, 0
        %849 = vmatpush.bf16.msra.mxu0 0
        %850 = vmatpush.bf16.msra.mxu0 0
        %851 = vmatpush.bf16.msra.mxu0 0
        %852 = vmatpush.bf16.msra.mxu0 0
        %853 = vmatpush.bf16.msra.mxu0 %v841
        %854 = vmatpush.bf16.msra.mxu0 %v840
        %855 = vmatpush.bf16.msra.mxu0 %v839
        %856 = vmatpush.bf16.msra.mxu0 %v838
        %857 = vmatmul.bf16.gmra.mxu0 %v847
        %v858 = vpop.f32.mrf.mxu0
        %v859 = vadd.f32 %v820, %v858
        %v860 = vpop.f32.mrf.mxu0
        %v861 = vadd.f32 %v820, %v860
        %862 = vdwg.mxu0
        %v863 = vmax.f32 %v859, -20.0
        %v864 = vmax.f32 %v861, -20.0
        %v865 = vmin.f32 %v863, 0.0
        %v866 = vmin.f32 %v864, 0.0
        %v867 = vmul.f32 %v865, 1.442695
        %v868 = vpow.pop %v867
        %v869 = vmul.f32 %v866, 1.442695
        %v870 = vpow.pop %v869
        %vm871 = vcmask 64512
        %v872 = vsel %vm871, %v859, %v868
        %v873 = vsel %vm871, %v861, %v870
        %874 = vst.msk [vmem:[%s481] sm:$0xff] %vm535, %v872
        %875 = vst.msk [vmem:[%s481 + $0x8] sm:$0xff] %vm535, %v873
        %s876 = smul.u32 2, %s25
        %p877 = scmp.lt.s32.totalorder %s876, 3
        %s878 = scalar_select %p877, %s876, 3
        %s879 = smul.addr %s878, 8
        %s880 = scalar_lea.vmem %s13, %s879
        // Predicated region
        $region77: #{tpu_custom_call.1} parent=71 // pred_check
          %p881 = pneg %p326
        $region78: #{tpu_custom_call.1} parent=71 // pred_check_branch
          %883 = sbr.rel (%p881) target = $region80
        $region79: #{tpu_custom_call.1} parent=71 // pred_region
          %s884 = smul.u32 2, %s25
        $region80: #{tpu_custom_call.1} parent=71 // pred_fallthru
          _
      $region72: #{tpu_custom_call.1} parent=5 // pred_fallthru
        _
      %p885 = scmp.le.s32.totalorder 2, %s20
      // Predicated region
      $region81: #{tpu_custom_call.1} parent=5 // pred_check
        %p886 = pneg %p885
      $region82: #{tpu_custom_call.1} parent=5 // pred_check_branch
        %888 = sbr.rel (%p886) target = $region84
      $region83: #{tpu_custom_call.1} parent=5 // pred_region
        %s889 = ssub.s32 %s20, 2
        // Predicated region
        $region85: #{tpu_custom_call.1} parent=83 // pred_check
          %p890 = pneg %p332
        $region86: #{tpu_custom_call.1} parent=83 // pred_check_branch
          %892 = sbr.rel (%p890) target = $region88
        $region87: #{tpu_custom_call.1} parent=83 // pred_region
          %s893 = smul.u32 2, %s26
          %p894 = scmp.lt.s32.totalorder %s893, 3
          %s895 = scalar_select %p894, %s893, 3
          %s896 = smul.addr %s895, 8
          %s897 = scalar_lea.vmem %s13, %s896
        $region88: #{tpu_custom_call.1} parent=83 // pred_fallthru
          _
      $region84: #{tpu_custom_call.1} parent=5 // pred_fallthru
        _
    $region6: #{tpu_custom_call.1} parent=1 // loop_footer
      %s24 = sadd.s32 1, %s20
    $region7: #{tpu_custom_call.1} parent=1 // loop_footer_branch
      %19 = sbr.rel target = $region3
    $region8: #{tpu_custom_call.1} parent=1 // loop_exit
      _
    %898 = vsyncpa [#allocation3], 1
    %s899 = scalar_lea.sflag [#allocation3], 1
    %900 = vsyncpa %s899, 1

</llo_original>
